<compile_context>
chip_gen: v7x
topology: tpu7x:2x2x1
jax: 0.10.0
libtpu: 0.0.40
codegen_flags: <defaults>
</compile_context>

<pallas_src>
import functools

import jax
import jax.numpy as jnp
from jax.experimental import pallas as pl
from jax.experimental.pallas import tpu as pltpu


def _normalize_kernel(mean_ref, inv_std_ref, x_ref, o_ref, *, num_channels, rows_tile):
    # mean_ref / inv_std_ref : (C,) f32, resident in SMEM (loaded once, no per-step DMA).
    # x_ref / o_ref          : (rows_tile, lane_tile) VMEM tiles of the (N*C, H*W) view.
    i = pl.program_id(0)                                   # row-block index
    row = jax.lax.broadcasted_iota(jnp.int32, (rows_tile, 1), 0) + i * rows_tile
    ch = row % num_channels                                # row = n*C + c  ->  channel = row % C
    m = jnp.where(ch == 0, mean_ref[0], 0.0).astype(jnp.float32)
    s = jnp.where(ch == 0, inv_std_ref[0], 0.0).astype(jnp.float32)
    for k in range(1, num_channels):                       # C=3 -> 2 extra select pairs (VPU slack)
        m = jnp.where(ch == k, mean_ref[k], m)
        s = jnp.where(ch == k, inv_std_ref[k], s)
    x = x_ref[...].astype(jnp.float32)
    o_ref[...] = ((x - m) * s).astype(o_ref.dtype)


def _vmem_capacity_bytes():
    try:
        return int(pltpu.get_tpu_info().vmem_capacity_bytes)
    except Exception:
        return 64 << 20  # conservative fallback (v7x per-TC); a valid cap on every generation


def _choose_tiles(nc, hw, itemsize, budget):
    """Pick (rows_tile, lane_tile) respecting the (8,128) rule and the VMEM tile budget."""
    # Lane (last) dim: keep it full if an 8-row slab fits the budget, else the largest
    # multiple of 128 such that an 8-row tile fits (stores stay unmasked).
    if hw <= 128 or 8 * hw * itemsize <= budget:
        lane_tile = hw
    else:
        lane_tile = max(128, (budget // (8 * itemsize)) // 128 * 128)
    # Row (sublane) dim: as many rows as fit the budget, multiple of 8 (or the full nc).
    max_rows = max(1, budget // (lane_tile * itemsize))
    if nc <= max_rows:
        rows_tile = nc
    else:
        rows_tile = max(8, (max_rows // 8) * 8)
    # Never collapse to a single grid step when splittable: v7x shards the "parallel"
    # axes across its 2 TensorCores (harmless on single-TC v5e/v6e).
    if pl.cdiv(nc, rows_tile) * pl.cdiv(hw, lane_tile) == 1:
        if nc >= 16:
            rows_tile = max(8, ((-(-nc // 2)) // 8) * 8)
        elif hw >= 256:
            lane_tile = max(128, ((-(-hw // 2)) // 128) * 128)
    return rows_tile, lane_tile


def normalize(x, mean, std, *, tile_budget_bytes=4 << 20):
    """(x - mean.reshape(1,C,1,1)) / std.reshape(1,C,1,1) via a Pallas TPU kernel."""
    n, c, h, w = x.shape
    assert mean.shape == (c,) and std.shape == (c,)
    nc, hw = n * c, h * w

    # Never truncate the normalized floats into an integer image dtype.
    out_dtype = x.dtype if jnp.issubdtype(x.dtype, jnp.floating) else jnp.float32
    in_item = jnp.dtype(x.dtype).itemsize
    out_item = jnp.dtype(out_dtype).itemsize

    # Zero-cost lane-dense view + tiny per-channel constants (exact f32 reciprocal once).
    xf = x.reshape(nc, hw)
    mean_f32 = mean.astype(jnp.float32)
    inv_std_f32 = 1.0 / std.astype(jnp.float32)

    rows_tile, lane_tile = _choose_tiles(nc, hw, max(in_item, out_item), tile_budget_bytes)
    gr, gl = pl.cdiv(nc, rows_tile), pl.cdiv(hw, lane_tile)

    # Live set = double-buffered x tile + double-buffered out tile (SMEM constants ~0).
    live_bytes = 2 * rows_tile * lane_tile * (in_item + out_item)
    compiler_kwargs = dict(dimension_semantics=("parallel", "parallel"))
    if live_bytes > (12 << 20):
        cap = (3 * _vmem_capacity_bytes()) // 4
        compiler_kwargs["vmem_limit_bytes"] = int(min(live_bytes + (8 << 20), cap))

    kernel = functools.partial(_normalize_kernel, num_channels=c, rows_tile=rows_tile)

    out_flat = pl.pallas_call(
        kernel,
        out_shape=jax.ShapeDtypeStruct((nc, hw), out_dtype),
        grid=(gr, gl),
        in_specs=[
            pl.BlockSpec(memory_space=pltpu.MemorySpace.SMEM),        # mean  (C,) resident
            pl.BlockSpec(memory_space=pltpu.MemorySpace.SMEM),        # 1/std (C,) resident
            pl.BlockSpec((rows_tile, lane_tile), lambda i, j: (i, j)),  # x tile
        ],
        out_specs=pl.BlockSpec((rows_tile, lane_tile), lambda i, j: (i, j)),
        compiler_params=pltpu.CompilerParams(**compiler_kwargs),
        cost_estimate=pl.CostEstimate(
            flops=2 * nc * hw,
            transcendentals=0,
            bytes_accessed=nc * hw * (in_item + out_item),
        ),
    )(mean_f32, inv_std_f32, xf)

    return out_flat.reshape(n, c, h, w)


if __name__ == "__main__":
    key = jax.random.PRNGKey(0)
    N, C, H, W = 2, 3, 16, 16  # Normalize module hard-codes 3 channels

    x = jax.random.normal(key, (N, C, H, W), dtype=jnp.float32)
    # Deterministic buffers (standard ImageNet-style normalization constants).
    mean = jnp.array([0.485, 0.456, 0.406], dtype=jnp.float32)
    std = jnp.array([0.229, 0.224, 0.225], dtype=jnp.float32)

    out = normalize(x, mean, std)
    out = jax.block_until_ready(out)

    # Reference check (plain JAX, mirrors the PyTorch broadcast semantics).
    ref = (x - mean.reshape(1, C, 1, 1)) / std.reshape(1, C, 1, 1)
    assert out.shape == (N, C, H, W)
    assert out.dtype == jnp.float32
    assert jnp.allclose(out, ref, rtol=1e-6, atol=1e-6)

    print("KERNEL_OK")
</pallas_src>

<mosaic_0001>
module attributes {stable_mosaic.version = 11 : i64} {
  func.func @_normalize_kernel(%arg0: i32, %arg1: i32, %arg2: memref<3xf32, #tpu.memory_space<smem>>, %arg3: memref<3xf32, #tpu.memory_space<smem>>, %arg4: memref<6x128xf32, #tpu.memory_space<vmem>>, %arg5: memref<6x128xf32, #tpu.memory_space<vmem>>) attributes {dimension_semantics = [#tpu.dimension_semantics<parallel>, #tpu.dimension_semantics<parallel>], iteration_bounds = array<i64: 1, 2>, scalar_prefetch = 0 : i64, scratch_operands = 0 : i64, tpu.core_type = #tpu.core_type<tc>, window_params = [{transform_indices = @transform_0, window_bounds = array<i64: 3>}, {transform_indices = @transform_1, window_bounds = array<i64: 3>}, {transform_indices = @transform_2, window_bounds = array<i64: 6, 128>}, {transform_indices = @transform_3, window_bounds = array<i64: 6, 128>}]} {
    %0 = tpu.iota {dimensions = array<i32: 0>} : vector<6x1xi32>
    %c6_i32 = arith.constant 6 : i32
    %1 = arith.muli %arg0, %c6_i32 : i32
    %2 = vector.broadcast %1 : i32 to vector<6x1xi32>
    %3 = arith.addi %0, %2 : vector<6x1xi32>
    %c3_i32 = arith.constant 3 : i32
    %c0_i32 = arith.constant 0 : i32
    %4 = arith.cmpi eq, %c3_i32, %c0_i32 : i32
    %c1_i32 = arith.constant 1 : i32
    %5 = arith.select %4, %c1_i32, %c3_i32 : i32
    %6 = vector.broadcast %5 : i32 to vector<6x1xi32>
    %7 = arith.remsi %3, %6 : vector<6x1xi32>
    %c0_i32_0 = arith.constant 0 : i32
    %8 = vector.broadcast %c0_i32_0 : i32 to vector<6x1xi32>
    %9 = arith.cmpi ne, %7, %8 : vector<6x1xi32>
    %c0_i32_1 = arith.constant 0 : i32
    %10 = vector.broadcast %c0_i32_1 : i32 to vector<6x1xi32>
    %11 = arith.cmpi slt, %7, %10 : vector<6x1xi32>
    %c0_i32_2 = arith.constant 0 : i32
    %12 = arith.cmpi slt, %5, %c0_i32_2 : i32
    %13 = vector.broadcast %12 : i1 to vector<6x1xi1>
    %14 = vector.broadcast %13 : vector<6x1xi1> to vector<6x1xi1>
    %15 = arith.xori %11, %14 : vector<6x1xi1>
    %16 = arith.andi %15, %9 : vector<6x1xi1>
    %17 = vector.broadcast %5 : i32 to vector<6x1xi32>
    %18 = arith.addi %7, %17 : vector<6x1xi32>
    %19 = arith.select %16, %18, %7 : vector<6x1xi1>, vector<6x1xi32>
    %c0_i32_3 = arith.constant 0 : i32
    %20 = vector.broadcast %c0_i32_3 : i32 to vector<6x1xi32>
    %21 = arith.cmpi eq, %19, %20 : vector<6x1xi32>
    %c0 = arith.constant 0 : index
    %22 = memref.load %arg2[%c0] : memref<3xf32, #tpu.memory_space<smem>>
    %cst = arith.constant 0.000000e+00 : f32
    %23 = vector.broadcast %22 : f32 to vector<6x1xf32>
    %24 = vector.broadcast %cst : f32 to vector<6x1xf32>
    %25 = arith.select %21, %23, %24 : vector<6x1xi1>, vector<6x1xf32>
    %c0_i32_4 = arith.constant 0 : i32
    %26 = vector.broadcast %c0_i32_4 : i32 to vector<6x1xi32>
    %27 = arith.cmpi eq, %19, %26 : vector<6x1xi32>
    %c0_5 = arith.constant 0 : index
    %28 = memref.load %arg3[%c0_5] : memref<3xf32, #tpu.memory_space<smem>>
    %cst_6 = arith.constant 0.000000e+00 : f32
    %29 = vector.broadcast %28 : f32 to vector<6x1xf32>
    %30 = vector.broadcast %cst_6 : f32 to vector<6x1xf32>
    %31 = arith.select %27, %29, %30 : vector<6x1xi1>, vector<6x1xf32>
    %c1_i32_7 = arith.constant 1 : i32
    %32 = vector.broadcast %c1_i32_7 : i32 to vector<6x1xi32>
    %33 = arith.cmpi eq, %19, %32 : vector<6x1xi32>
    %c1 = arith.constant 1 : index
    %34 = memref.load %arg2[%c1] : memref<3xf32, #tpu.memory_space<smem>>
    %35 = vector.broadcast %34 : f32 to vector<6x1xf32>
    %36 = arith.select %33, %35, %25 : vector<6x1xi1>, vector<6x1xf32>
    %c1_i32_8 = arith.constant 1 : i32
    %37 = vector.broadcast %c1_i32_8 : i32 to vector<6x1xi32>
    %38 = arith.cmpi eq, %19, %37 : vector<6x1xi32>
    %c1_9 = arith.constant 1 : index
    %39 = memref.load %arg3[%c1_9] : memref<3xf32, #tpu.memory_space<smem>>
    %40 = vector.broadcast %39 : f32 to vector<6x1xf32>
    %41 = arith.select %38, %40, %31 : vector<6x1xi1>, vector<6x1xf32>
    %c2_i32 = arith.constant 2 : i32
    %42 = vector.broadcast %c2_i32 : i32 to vector<6x1xi32>
    %43 = arith.cmpi eq, %19, %42 : vector<6x1xi32>
    %c2 = arith.constant 2 : index
    %44 = memref.load %arg2[%c2] : memref<3xf32, #tpu.memory_space<smem>>
    %45 = vector.broadcast %44 : f32 to vector<6x1xf32>
    %46 = arith.select %43, %45, %36 : vector<6x1xi1>, vector<6x1xf32>
    %c2_i32_10 = arith.constant 2 : i32
    %47 = vector.broadcast %c2_i32_10 : i32 to vector<6x1xi32>
    %48 = arith.cmpi eq, %19, %47 : vector<6x1xi32>
    %c2_11 = arith.constant 2 : index
    %49 = memref.load %arg3[%c2_11] : memref<3xf32, #tpu.memory_space<smem>>
    %50 = vector.broadcast %49 : f32 to vector<6x1xf32>
    %51 = arith.select %48, %50, %41 : vector<6x1xi1>, vector<6x1xf32>
    %c0_12 = arith.constant 0 : index
    %c0_13 = arith.constant 0 : index
    %52 = vector.load %arg4[%c0_12, %c0_13] : memref<6x128xf32, #tpu.memory_space<vmem>>, vector<6x128xf32>
    %53 = vector.broadcast %46 : vector<6x1xf32> to vector<6x128xf32>
    %54 = arith.subf %52, %53 : vector<6x128xf32>
    %55 = vector.broadcast %51 : vector<6x1xf32> to vector<6x128xf32>
    %56 = arith.mulf %54, %55 : vector<6x128xf32>
    %c0_14 = arith.constant 0 : index
    %c0_15 = arith.constant 0 : index
    %57 = vector.load %arg5[%c0_14, %c0_15] : memref<6x128xf32, #tpu.memory_space<vmem>>, vector<6x128xf32>
    tpu.vector_store %arg5[%c0_14, %c0_15], %56 {strides = array<i32>} : memref<6x128xf32, #tpu.memory_space<vmem>>, vector<6x128xf32>,
    return
  }
  func.func @transform_0(%arg0: i32, %arg1: i32) -> i32 {
    %c0_i32 = arith.constant 0 : i32
    %c0_i32_0 = arith.constant 0 : i32
    return %c0_i32 : i32
  }
  func.func @transform_1(%arg0: i32, %arg1: i32) -> i32 {
    %c0_i32 = arith.constant 0 : i32
    %c0_i32_0 = arith.constant 0 : i32
    return %c0_i32 : i32
  }
  func.func @transform_2(%arg0: i32, %arg1: i32) -> (i32, i32) {
    %c0_i32 = arith.constant 0 : i32
    return %arg0, %arg1 : i32, i32
  }
  func.func @transform_3(%arg0: i32, %arg1: i32) -> (i32, i32) {
    %c0_i32 = arith.constant 0 : i32
    return %arg0, %arg1 : i32, i32
  }
}

</mosaic_0001>

<llo_original>
// kernel: tpu_custom_call.1
$region0: #{tpu_custom_call.1}
  #allocation0 [shape = 'u32[]', space=smem, size = 0x4, offset = 0x4, fixed_abs, tag = 'smem constant byte address 0x4 - core index']
  #allocation1 [shape = 'u32[144,128]{1,0:T(1,128)}', space=vmem, size = 0x12000, scoped, tag = 'internal scratch']
  %s0 = inlined_call_operand.hbm [shape: f32[3], index: 0, kind: input, shape index: {}]
  %s1 = inlined_call_operand.vmem [shape: f32[3], index: 1, kind: input, shape index: {}]
  %s2 = inlined_call_operand.hbm [shape: f32[6,256], index: 2, kind: input, shape index: {}]
  %s3 = inlined_call_operand.hbm [shape: f32[6,256], index: 3, kind: output, shape index: {}]
  %s4 = sld [smem:[#allocation0]]
  $region57: #{tpu_custom_call.1} parent=0
    _
  %s6 = ssub.s32 1, %s4
  %s7 = scalar_select 0, %s6, %s4
  $region1: #{tpu_custom_call.1} parent=0
    #allocation2 [shape = 'u8[512]{0}', space=smem, size = 0x200, scoped, tag = 'input window, operand 0, single buffered']
    #allocation3 [shape = 's32[2]{0}', space=sflag, size = 0x8, scoped, tag = 'scoped memory for tpu_custom_call.1']
    #allocation4 [shape = 's32[2]{0}', space=sflag, size = 0x8, scoped, tag = 'scoped memory for tpu_custom_call.1']
    #allocation5 [shape = 's32[2]{0}', space=sflag, size = 0x8, scoped, tag = 'scoped memory for tpu_custom_call.1']
    #allocation6 [shape = 's32[2]{0}', space=sflag, size = 0x8, scoped, tag = 'scoped memory for tpu_custom_call.1']
    #allocation7 [shape = 'u8[512]{0}', space=smem, size = 0x200, scoped, tag = 'input window, operand 1, single buffered']
    #allocation8 [shape = 'u8[8192]{0}', space=vmem, size = 0x2000, scoped, tag = 'input window, operand 2']
    #allocation9 [shape = 'u8[8192]{0}', space=vmem, size = 0x2000, scoped, tag = 'output window, operand 0']
    %8 = vsyncpa [#allocation5], 0
    %9 = vsyncpa [#allocation6], 0
    %10 = vsyncpa [#allocation3], 0
    %s11 = scalar_lea.sflag [#allocation3], 1
    %12 = vsyncpa %s11, 0
    %13 = vsyncpa [#allocation4], 0
    %s14 = scalar_lea.sflag [#allocation4], 1
    %15 = vsyncpa %s14, 0
    loop: start=0, step=1, limit=4
    $region2: #{tpu_custom_call.1} parent=1 // loop_pre_header
      _
    $region3: #{tpu_custom_call.1} parent=1 // loop_header
      %s17 = sphi 0, %s21
      %p18 = scmp.ge.s32.totalorder %s17, 4
      %s24 = sphi 0, %s36
      %s25 = sphi 0, %s32
      %s26 = sphi 0, %s24
      %s27 = sphi 0, %s25
      %s28 = sphi 0, %s26
      %s29 = sphi 0, %s27
      %s37 = sphi 0, %s37
      %s39 = sphi 0, %s37
      %s40 = sphi 0, %s39
      %s54 = sphi 0, %s40
      %s58 = sphi 0, %s58
      %s60 = sphi 0, %s58
      %s61 = sphi 0, %s60
      %s75 = sphi 0, %s61
      %s83 = sphi 0, %s85
      %s86 = sphi 0, %s83
      %s87 = sphi 0, %s86
      %s103 = sphi 0, %s87
      %s111 = sphi 0, %s113
      %s114 = sphi 0, %s111
      %s115 = sphi 0, %s114
      %s131 = sphi 0, %s115
    $region4: #{tpu_custom_call.1} parent=1 // loop_header_branch
      %20 = sbr.rel (%p18) target = $region8
    $region5: #{tpu_custom_call.1} parent=1 // loop_body
      %s22 = ssub.s32 %s17, 1
      %s23 = ssub.s32 %s17, 2
      %s30 = sadd.s32 1, %s25
      %p31 = scmp.ge.s32.totalorder %s30, 2
      %s32 = scalar_select %p31, 0, %s30
      %s33 = sadd.s32 1, %s24
      %s34 = scalar_select %p31, %s33, %s24
      %p35 = scmp.ge.s32.totalorder %s34, 1
      %s36 = scalar_select %p35, 0, %s34
      %s38 = sadd.s32 %s37, 1
      %p41 = scmp.eq.s32.totalorder %s17, 1
      %p42 = scmp.ne.s32.totalorder %s37, %s39
      %p43 = scmp.eq.s32.totalorder %s17, 0
      %p44 = por %p42, %p43
      %p45 = scmp.ne.s32.totalorder %s37, %s39
      %p46 = scmp.eq.s32.totalorder %s22, 1
      %p47 = por %p45, %p46
      %p48 = scmp.ne.s32.totalorder %s39, %s40
      %p49 = scmp.eq.s32.totalorder %s22, 0
      %p50 = por %p48, %p49
      %p51 = scmp.ne.s32.totalorder %s39, %s40
      %p52 = scmp.eq.s32.totalorder %s23, 1
      %p53 = por %p51, %p52
      %p55 = scmp.ne.s32.totalorder %s40, %s54
      %p56 = scmp.eq.s32.totalorder %s23, 0
      %p57 = por %p55, %p56
      %s59 = sadd.s32 %s58, 1
      %p62 = scmp.eq.s32.totalorder %s17, 1
      %p63 = scmp.ne.s32.totalorder %s58, %s60
      %p64 = scmp.eq.s32.totalorder %s17, 0
      %p65 = por %p63, %p64
      %p66 = scmp.ne.s32.totalorder %s58, %s60
      %p67 = scmp.eq.s32.totalorder %s22, 1
      %p68 = por %p66, %p67
      %p69 = scmp.ne.s32.totalorder %s60, %s61
      %p70 = scmp.eq.s32.totalorder %s22, 0
      %p71 = por %p69, %p70
      %p72 = scmp.ne.s32.totalorder %s60, %s61
      %p73 = scmp.eq.s32.totalorder %s23, 1
      %p74 = por %p72, %p73
      %p76 = scmp.ne.s32.totalorder %s61, %s75
      %p77 = scmp.eq.s32.totalorder %s23, 0
      %p78 = por %p76, %p77
      %s79 = ssub.s32 %s24, %s36
      %s80 = ssub.s32 %s25, %s32
      %s81 = sor.u32 %s79, %s80
      %p82 = scmp.eq.s32.totalorder %s81, 0
      %s84 = sadd.s32 %s83, 1
      %s85 = scalar_select %p82, %s83, %s84
      %p88 = pneg %p82
      %p89 = scmp.eq.s32.totalorder %s17, 1
      %p90 = por %p88, %p89
      %p91 = scmp.ne.s32.totalorder %s83, %s86
      %p92 = scmp.eq.s32.totalorder %s17, 0
      %p93 = por %p91, %p92
      %p94 = scmp.ne.s32.totalorder %s83, %s86
      %p95 = scmp.eq.s32.totalorder %s22, 1
      %p96 = por %p94, %p95
      %p97 = scmp.ne.s32.totalorder %s86, %s87
      %p98 = scmp.eq.s32.totalorder %s22, 0
      %p99 = por %p97, %p98
      %p100 = scmp.ne.s32.totalorder %s86, %s87
      %p101 = scmp.eq.s32.totalorder %s23, 1
      %p102 = por %p100, %p101
      %p104 = scmp.ne.s32.totalorder %s87, %s103
      %p105 = scmp.eq.s32.totalorder %s23, 0
      %p106 = por %p104, %p105
      %s107 = ssub.s32 %s24, %s36
      %s108 = ssub.s32 %s25, %s32
      %s109 = sor.u32 %s107, %s108
      %p110 = scmp.eq.s32.totalorder %s109, 0
      %s112 = sadd.s32 %s111, 1
      %s113 = scalar_select %p110, %s111, %s112
      %p116 = pneg %p110
      %p117 = scmp.eq.s32.totalorder %s17, 1
      %p118 = por %p116, %p117
      %p119 = scmp.ne.s32.totalorder %s111, %s114
      %p120 = scmp.eq.s32.totalorder %s17, 0
      %p121 = por %p119, %p120
      %p122 = scmp.ne.s32.totalorder %s111, %s114
      %p123 = scmp.eq.s32.totalorder %s22, 1
      %p124 = por %p122, %p123
      %p125 = scmp.ne.s32.totalorder %s114, %s115
      %p126 = scmp.eq.s32.totalorder %s22, 0
      %p127 = por %p125, %p126
      %p128 = scmp.ne.s32.totalorder %s114, %s115
      %p129 = scmp.eq.s32.totalorder %s23, 1
      %p130 = por %p128, %p129
      %p132 = scmp.ne.s32.totalorder %s115, %s131
      %p133 = scmp.eq.s32.totalorder %s23, 0
      %p134 = por %p132, %p133
      %p135 = scmp.le.s32.totalorder 1, %s17
      %p136 = scmp.lt.s32.totalorder %s17, 3
      %p137 = pnand %p135, %p136
      %p138 = pneg %p137
      // Predicated region
      $region9: #{tpu_custom_call.1} parent=5 // pred_check
        _
      $region10: #{tpu_custom_call.1} parent=5 // pred_check_branch
        %140 = sbr.rel (%p137) target = $region12
      $region11: #{tpu_custom_call.1} parent=5 // pred_region
        %s141 = ssub.s32 %s17, 1
        // Predicated region
        $region13: #{tpu_custom_call.1} parent=11 // pred_check
          %p142 = pneg %p50
        $region14: #{tpu_custom_call.1} parent=11 // pred_check_branch
          %144 = sbr.rel (%p142) target = $region16
        $region15: #{tpu_custom_call.1} parent=11 // pred_region
          %s146 = ssub.s32 16, 16
          %147 = vsyncadd [#allocation5], %s146
          %150 = dma.hbm_to_smem %s0, 16, [#allocation2], [#allocation5]
        $region16: #{tpu_custom_call.1} parent=11 // pred_fallthru
          _
        // Predicated region
        $region17: #{tpu_custom_call.1} parent=11 // pred_check
          %p151 = pneg %p71
        $region18: #{tpu_custom_call.1} parent=11 // pred_check_branch
          %153 = sbr.rel (%p151) target = $region20
        $region19: #{tpu_custom_call.1} parent=11 // pred_region
          %s155 = ssub.s32 16, 16
          %156 = vsyncadd [#allocation6], %s155
          %s158 = sshll.u32 %s1, 4
          %s159 = int_to_ptr.vmem [resolvable:$true] %s158
          %161 = dma.vmem_to_smem %s159, 16, [#allocation7], [#allocation6]
        $region20: #{tpu_custom_call.1} parent=11 // pred_fallthru
          _
      $region12: #{tpu_custom_call.1} parent=5 // pred_fallthru
        _
      %p162 = scmp.lt.s32.totalorder %s17, 2
      // Predicated region
      $region21: #{tpu_custom_call.1} parent=5 // pred_check
        %p163 = pneg %p162
      $region22: #{tpu_custom_call.1} parent=5 // pred_check_branch
        %165 = sbr.rel (%p163) target = $region24
      $region23: #{tpu_custom_call.1} parent=5 // pred_region
        // Predicated region
        $region25: #{tpu_custom_call.1} parent=23 // pred_check
          %p166 = pneg %p93
        $region26: #{tpu_custom_call.1} parent=23 // pred_check_branch
          %168 = sbr.rel (%p166) target = $region28
        $region27: #{tpu_custom_call.1} parent=23 // pred_region
          %s169 = sand.u32 %s83, 1
          %s170 = scalar_lea.sflag [#allocation3], %s169
          %s171 = sand.u32 %s83, 1
          %s172 = smul.addr %s171, 8
          %s173 = scalar_lea.vmem [#allocation8], %s172
          %s175 = ssub.s32 128, 128
          %176 = vsyncadd %s170, %s175
          %s177 = smul.addr %s24, 2
          %s178 = sadd.s32 %s25, %s177
          %s179 = smul.addr %s178, 128
          %s180 = scalar_lea.hbm %s2, %s179
          %s182 = sshll.u32 %s173, 4
          %s183 = int_to_ptr.vmem [resolvable:$true] %s182
          %185 = dma.hbm_to_vmem [thread:$0]  %s180, 128, %s183, %s170
        $region28: #{tpu_custom_call.1} parent=23 // pred_fallthru
          _
      $region24: #{tpu_custom_call.1} parent=5 // pred_fallthru
        _
      %p186 = scmp.le.s32.totalorder 1, %s17
      %p187 = scmp.lt.s32.totalorder %s17, 3
      %p188 = pnand %p186, %p187
      %p189 = pneg %p188
      // Predicated region
      $region29: #{tpu_custom_call.1} parent=5 // pred_check
        _
      $region30: #{tpu_custom_call.1} parent=5 // pred_check_branch
        %191 = sbr.rel (%p188) target = $region32
      $region31: #{tpu_custom_call.1} parent=5 // pred_region
        %s192 = ssub.s32 %s17, 1
        // Predicated region
        $region33: #{tpu_custom_call.1} parent=31 // pred_check
          %p193 = pneg %p50
        $region34: #{tpu_custom_call.1} parent=31 // pred_check_branch
          %195 = sbr.rel (%p193) target = $region36
        $region35: #{tpu_custom_call.1} parent=31 // pred_region
          %196 = dma.done [#allocation5], 16
        $region36: #{tpu_custom_call.1} parent=31 // pred_fallthru
          _
        // Predicated region
        $region37: #{tpu_custom_call.1} parent=31 // pred_check
          %p197 = pneg %p71
        $region38: #{tpu_custom_call.1} parent=31 // pred_check_branch
          %199 = sbr.rel (%p197) target = $region40
        $region39: #{tpu_custom_call.1} parent=31 // pred_region
          %200 = dma.done [#allocation6], 16
        $region40: #{tpu_custom_call.1} parent=31 // pred_fallthru
          _
        %s201 = sand.u32 %s86, 1
        %s202 = scalar_lea.sflag [#allocation3], %s201
        %s203 = sand.u32 %s86, 1
        %s204 = smul.addr %s203, 8
        %s205 = scalar_lea.vmem [#allocation8], %s204
        // Predicated region
        $region41: #{tpu_custom_call.1} parent=31 // pred_check
          %p206 = pneg %p99
        $region42: #{tpu_custom_call.1} parent=31 // pred_check_branch
          %208 = sbr.rel (%p206) target = $region44
        $region43: #{tpu_custom_call.1} parent=31 // pred_region
          %209 = dma.done %s202, 128
        $region44: #{tpu_custom_call.1} parent=31 // pred_fallthru
          _
        %210 = sfence
        %p211 = pneg %p50
        %p212 = pneg %p47
        %p213 = pneg %p71
        %p214 = pneg %p68
        %s215 = sand.u32 %s86, 1
        %s216 = scalar_lea.sflag [#allocation3], %s215
        %s217 = sand.u32 %s86, 1
        %s218 = smul.addr %s217, 8
        %s219 = scalar_lea.vmem [#allocation8], %s218
        %p220 = pneg %p99
        %p221 = pneg %p96
        %p222 = pneg %p127
        %p223 = pneg %p124
        %s224 = sand.u32 %s114, 1
        %s225 = scalar_lea.sflag [#allocation4], %s224
        %s226 = sand.u32 %s114, 1
        %s227 = smul.addr %s226, 8
        %s228 = scalar_lea.vmem [#allocation9], %s227
        %v229 = vlaneseq
        %v230 = vshrl.u32 %v229, 7
        %s231 = smul.u32 %s26, 6
        %v232 = vstv %s231
        %v233 = vadd.s32 %v230, %v232
        %vm234 = vcmp.lt.s32.totalorder %v233, 0
        %v235 = vsub.s32 0, %v233
        %v236 = vsel %vm234, %v235, %v233
        %v237 = vmul.u32.u64.compose %v236, 2863311531
        %v238 = vextract.low.u32 %v237
        %v239 = vextract.high.u32 %v237
        %v240 = vshrl.u32 %v239, 1
        %v241 = vmul.u32 %v240, 3
        %v242 = vsub.s32 %v236, %v241
        %v243 = vsub.s32 0, %v242
        %v244 = vsel %vm234, %v243, %v242
        %vm245 = vcmp.ne.s32.totalorder %v244, 0
        %vm246 = vcmp.lt.s32.totalorder %v244, 0
        %vm247 = vmand %vm246, %vm245
        %v248 = vadd.s32 %v244, 3
        %v249 = vsel %vm247, %v248, %v244
        %vm250 = vcmp.eq.s32.totalorder %v249, 0
        %s251 = sld [smem:[#allocation2]]
        %v252 = vstv %s251
        %v253 = vsel %vm250, %v252, 0.0
        %s254 = sld [smem:[#allocation7]]
        %v255 = vstv %s254
        %v256 = vsel %vm250, %v255, 0.0
        %vm257 = vcmp.eq.s32.totalorder %v249, 1
        %s258 = sld [smem:[#allocation2 + $0x1]]
        %v259 = vstv %s258
        %v260 = vsel %vm257, %v259, %v253
        %s261 = sld [smem:[#allocation7 + $0x1]]
        %v262 = vstv %s261
        %v263 = vsel %vm257, %v262, %v256
        %vm264 = vcmp.eq.s32.totalorder %v249, 2
        %s265 = sld [smem:[#allocation2 + $0x2]]
        %v266 = vstv %s265
        %v267 = vsel %vm264, %v266, %v260
        %s268 = sld [smem:[#allocation7 + $0x2]]
        %v269 = vstv %s268
        %v270 = vsel %vm264, %v269, %v263
        %v271 = vld [vmem:[%s205] sm:$0x3f]
        %v272 = vsub.f32 %v271, %v267
        %v273 = vmul.f32 %v272, %v270
        %274 = vst [vmem:[%s228] sm:$0x3f] %v273
        %s275 = sand.u32 %s114, 1
        %s276 = scalar_lea.sflag [#allocation4], %s275
        %s277 = sand.u32 %s114, 1
        %s278 = smul.addr %s277, 8
        %s279 = scalar_lea.vmem [#allocation9], %s278
        // Predicated region
        $region45: #{tpu_custom_call.1} parent=31 // pred_check
          %p280 = pneg %p124
        $region46: #{tpu_custom_call.1} parent=31 // pred_check_branch
          %282 = sbr.rel (%p280) target = $region48
        $region47: #{tpu_custom_call.1} parent=31 // pred_region
          %s284 = ssub.s32 128, 128
          %285 = vsyncadd %s276, %s284
          %s286 = smul.addr %s26, 2
          %s287 = sadd.s32 %s27, %s286
          %s288 = smul.addr %s287, 128
          %s289 = scalar_lea.hbm %s3, %s288
          %s291 = sshll.u32 %s279, 4
          %s292 = int_to_ptr.vmem [resolvable:$true] %s291
          %294 = dma.vmem_to_hbm [thread:$0]  %s292, 128, %s289, %s276
        $region48: #{tpu_custom_call.1} parent=31 // pred_fallthru
          _
      $region32: #{tpu_custom_call.1} parent=5 // pred_fallthru
        _
      %p295 = scmp.le.s32.totalorder 2, %s17
      // Predicated region
      $region49: #{tpu_custom_call.1} parent=5 // pred_check
        %p296 = pneg %p295
      $region50: #{tpu_custom_call.1} parent=5 // pred_check_branch
        %298 = sbr.rel (%p296) target = $region52
      $region51: #{tpu_custom_call.1} parent=5 // pred_region
        %s299 = ssub.s32 %s17, 2
        // Predicated region
        $region53: #{tpu_custom_call.1} parent=51 // pred_check
          %p300 = pneg %p130
        $region54: #{tpu_custom_call.1} parent=51 // pred_check_branch
          %302 = sbr.rel (%p300) target = $region56
        $region55: #{tpu_custom_call.1} parent=51 // pred_region
          %s303 = sand.u32 %s115, 1
          %s304 = scalar_lea.sflag [#allocation4], %s303
          %s305 = sand.u32 %s115, 1
          %s306 = smul.addr %s305, 8
          %s307 = scalar_lea.vmem [#allocation9], %s306
          %308 = dma.done %s304, 128
        $region56: #{tpu_custom_call.1} parent=51 // pred_fallthru
          _
      $region52: #{tpu_custom_call.1} parent=5 // pred_fallthru
        _
    $region6: #{tpu_custom_call.1} parent=1 // loop_footer
      %s21 = sadd.s32 1, %s17
    $region7: #{tpu_custom_call.1} parent=1 // loop_footer_branch
      %16 = sbr.rel target = $region3
    $region8: #{tpu_custom_call.1} parent=1 // loop_exit
      _
    %309 = vsyncpa [#allocation3], 1
    %s310 = scalar_lea.sflag [#allocation3], 1
    %311 = vsyncpa %s310, 1
    %312 = vsyncpa [#allocation4], 1
    %s313 = scalar_lea.sflag [#allocation4], 1
    %314 = vsyncpa %s313, 1
    %315 = vsyncpa [#allocation5], 1
    %s316 = scalar_lea.sflag [#allocation5], 1
    %317 = vsyncpa %s316, 1
    %318 = vsyncpa [#allocation6], 1
    %s319 = scalar_lea.sflag [#allocation6], 1
    %320 = vsyncpa %s319, 1

</llo_original>
